<compile_context>
chip_gen: v5e
topology: v5e:2x2
jax: 0.10.0
libtpu: 0.0.40
codegen_flags: <defaults>
</compile_context>

<pallas_src>
import jax
import jax.numpy as jnp
from jax.experimental import pallas as pl
from jax.experimental.pallas import tpu as pltpu

NUM_FEATURES = 16    # the module's global `num_features`
LAYER_SIZE = 32      # Layer_size passed to __init__
LEAKY_SLOPE = 0.01   # nn.LeakyReLU default negative_slope

COMPUTE_DTYPE = jnp.bfloat16   # MXU operand dtype (accumulation stays f32)


def _round_up(x, m):
    return ((x + m - 1) // m) * m


def _leaky_relu(x):
    return jnp.where(x >= 0, x, LEAKY_SLOPE * x)


def mte_kernel(x_ref,
               w1_ref, b1_ref,
               w2_ref, b2_ref,
               wh1_ref, bh1_ref,
               wh2_ref, bh2_ref,
               o1_ref, o2_ref):
    # bf16 MXU operands, f32 accumulation, f32 bias/activation math.
    x = x_ref[...].astype(COMPUTE_DTYPE)

    # body: Linear -> LeakyReLU -> Linear -> LeakyReLU  (block-diag packed)
    h = jnp.dot(x, w1_ref[...], preferred_element_type=jnp.float32) + b1_ref[...]
    h = _leaky_relu(h)
    h = jnp.dot(h.astype(COMPUTE_DTYPE), w2_ref[...],
                preferred_element_type=jnp.float32) + b2_ref[...]
    h = _leaky_relu(h)
    hb = h.astype(COMPUTE_DTYPE)

    # two heads: independent lane-dense matmuls, one unmasked store each.
    v1 = jnp.dot(hb, wh1_ref[...], preferred_element_type=jnp.float32) + bh1_ref[...]
    v2 = jnp.dot(hb, wh2_ref[...], preferred_element_type=jnp.float32) + bh2_ref[...]
    o1_ref[...] = v1.astype(o1_ref.dtype)
    o2_ref[...] = v2.astype(o2_ref.dtype)


def _pick_pack(B, requested):
    """Largest power-of-two pack factor that divides B, capped per generation."""
    if requested is None:
        try:
            kind = jax.devices()[0].device_kind.lower()
        except Exception:  # pragma: no cover
            kind = ""
        max_pack = 4 if "v5" in kind else 8     # v5e: keep it memory-bound
    else:
        max_pack = max(1, int(requested))
    p = 1
    while p * 2 <= max_pack and B % (p * 2) == 0:
        p *= 2
    return p


def multi_task_explainer(x, params, *, pack=None, block_rows=None,
                         out_dtype=jnp.float32):
    """x: (B, num_features). params: dict of (in,out) weights + (1,out) biases.

    Returns (v1, v2), each (B, 2*num_features), matching the PyTorch module.
    """
    B, F = x.shape
    L = params["w1"].shape[1]
    out_dim = params["wh1"].shape[1]          # 2 * num_features

    # --- lane packing: P original rows per packed row ------------------------
    P = _pick_pack(B, pack)
    Bp = B // P
    xp = x.reshape(Bp, P * F)                 # free, contiguous reshape

    eye_p = jnp.eye(P, dtype=COMPUTE_DTYPE)

    def block_diag(w):                        # (in,out) -> (P*in, P*out), bf16
        return jnp.kron(eye_p, w.astype(COMPUTE_DTYPE))

    def tile_bias(b):                         # (1,out) -> (1, P*out), f32
        return jnp.tile(b, (1, P))

    w1 = block_diag(params["w1"]);  b1 = tile_bias(params["b1"])
    w2 = block_diag(params["w2"]);  b2 = tile_bias(params["b2"])
    wh1 = block_diag(params["wh1"]); bh1 = tile_bias(params["bh1"])
    wh2 = block_diag(params["wh2"]); bh2 = tile_bias(params["bh2"])

    pf, pl_, pout = P * F, P * L, P * out_dim

    # --- batch tiling (in packed rows) ---------------------------------------
    # >=4 grid steps so the BlockSpec pipeline overlaps DMA/compute and v7x's
    # two TensorCores both get work; cap keeps the double-buffered working set
    # a few MiB (fine on v7x's 64 MiB VMEM as well as v5e/v6e's 128 MiB).
    if block_rows is None:
        block_bp = max(8, _round_up(pl.cdiv(Bp, 4), 8))
        block_bp = min(block_bp, 2048)
    else:
        block_bp = max(8, _round_up(int(block_rows), 8))
    block_bp = min(block_bp, Bp)              # tiny batches: one full-size block
    grid = (pl.cdiv(Bp, block_bp),)           # ragged last block handled by Pallas

    # --- VMEM budget / cost estimate -----------------------------------------
    out_isz = jnp.dtype(out_dtype).itemsize
    x_tile_bytes = block_bp * pf * 4
    o_tile_bytes = block_bp * pout * out_isz
    weight_bytes = sum(int(a.size) * jnp.dtype(a.dtype).itemsize
                       for a in (w1, b1, w2, b2, wh1, bh1, wh2, bh2))
    vmem_limit = min(2 * (x_tile_bytes + 2 * o_tile_bytes + weight_bytes)
                     + (8 << 20),             # intermediates + slack
                     48 << 20)                # v7x-safe cap

    flops = 2 * Bp * (pf * pl_ + pl_ * pl_ + 2 * pl_ * pout)   # actual MXU work
    bytes_accessed = (B * F * 4 + 2 * B * out_dim * out_isz + weight_bytes)
    cost = pl.CostEstimate(flops=flops, transcendentals=0,
                           bytes_accessed=bytes_accessed)

    # Weight/bias blocks are full arrays (constant index_map); x and the two
    # head outputs are tiled over the packed batch.
    full = lambda shape: pl.BlockSpec(shape, lambda i: tuple(0 for _ in shape))
    out_spec = pl.BlockSpec((block_bp, pout), lambda i: (i, 0))

    grid_spec = pltpu.PrefetchScalarGridSpec(
        num_scalar_prefetch=0,
        grid=grid,
        in_specs=[
            pl.BlockSpec((block_bp, pf), lambda i: (i, 0)),   # packed x
            full((pf, pl_)),  full((1, pl_)),                 # w1_bd, b1
            full((pl_, pl_)), full((1, pl_)),                 # w2_bd, b2
            full((pl_, pout)), full((1, pout)),               # wh1_bd, bh1
            full((pl_, pout)), full((1, pout)),               # wh2_bd, bh2
        ],
        out_specs=[out_spec, out_spec],
    )

    o1, o2 = pl.pallas_call(
        mte_kernel,
        out_shape=(jax.ShapeDtypeStruct((Bp, pout), out_dtype),
                   jax.ShapeDtypeStruct((Bp, pout), out_dtype)),
        grid_spec=grid_spec,
        compiler_params=pltpu.CompilerParams(
            dimension_semantics=("parallel",),
            vmem_limit_bytes=int(vmem_limit)),
        cost_estimate=cost,
    )(xp, w1, b1, w2, b2, wh1, bh1, wh2, bh2)

    # Free contiguous reshapes back to (B, 2*num_features).
    v1 = o1.reshape(B, out_dim)
    v2 = o2.reshape(B, out_dim)
    return v1, v2


def init_params(key, num_features=NUM_FEATURES, layer_size=LAYER_SIZE):
    """Deterministic synthetic weights; stored as (in, out) for the kernel."""
    ks = jax.random.split(key, 8)
    out_dim = 2 * num_features
    scale = 0.1

    def w(k, shape):
        return scale * jax.random.normal(k, shape, dtype=jnp.float32)

    return {
        "w1": w(ks[0], (num_features, layer_size)),
        "b1": w(ks[1], (1, layer_size)),
        "w2": w(ks[2], (layer_size, layer_size)),
        "b2": w(ks[3], (1, layer_size)),
        "wh1": w(ks[4], (layer_size, out_dim)),
        "bh1": w(ks[5], (1, out_dim)),
        "wh2": w(ks[6], (layer_size, out_dim)),
        "bh2": w(ks[7], (1, out_dim)),
    }


def reference_forward_bf16(x, p):
    """Pure-JAX reference mirroring the kernel's bf16-operand / f32-acc math."""
    c = lambda a: a.astype(COMPUTE_DTYPE)
    h = jnp.dot(c(x), c(p["w1"]), preferred_element_type=jnp.float32) + p["b1"]
    h = jnp.where(h >= 0, h, LEAKY_SLOPE * h)
    h = jnp.dot(c(h), c(p["w2"]), preferred_element_type=jnp.float32) + p["b2"]
    h = jnp.where(h >= 0, h, LEAKY_SLOPE * h)
    v1 = jnp.dot(c(h), c(p["wh1"]), preferred_element_type=jnp.float32) + p["bh1"]
    v2 = jnp.dot(c(h), c(p["wh2"]), preferred_element_type=jnp.float32) + p["bh2"]
    return v1, v2


def reference_forward_f32(x, p):
    h = x @ p["w1"] + p["b1"]
    h = jnp.where(h >= 0, h, LEAKY_SLOPE * h)
    h = h @ p["w2"] + p["b2"]
    h = jnp.where(h >= 0, h, LEAKY_SLOPE * h)
    return h @ p["wh1"] + p["bh1"], h @ p["wh2"] + p["bh2"]


if __name__ == "__main__":
    key = jax.random.PRNGKey(0)
    k_x, k_p = jax.random.split(key)

    B = 8
    x = jax.random.normal(k_x, (B, NUM_FEATURES), dtype=jnp.float32)
    params = init_params(k_p)

    v1, v2 = multi_task_explainer(x, params)
    jax.block_until_ready((v1, v2))

    assert v1.shape == (B, 2 * NUM_FEATURES) and v2.shape == (B, 2 * NUM_FEATURES)
    assert v1.dtype == jnp.float32 and v2.dtype == jnp.float32

    # Check vs. a reference that uses the same bf16 operands / f32 accumulation.
    r1, r2 = reference_forward_bf16(x, params)
    assert jnp.allclose(v1, r1, atol=2e-3, rtol=2e-3)
    assert jnp.allclose(v2, r2, atol=2e-3, rtol=2e-3)

    # Sanity check vs. full-f32 math (bf16 operand rounding only).
    f1, f2 = reference_forward_f32(x, params)
    assert jnp.allclose(v1, f1, atol=5e-2, rtol=5e-2)
    assert jnp.allclose(v2, f2, atol=5e-2, rtol=5e-2)

    print("KERNEL_OK")
</pallas_src>

<mosaic_0001>
module attributes {stable_mosaic.version = 11 : i64} {
  func.func @mte_kernel(%arg0: i32, %arg1: memref<1x128xf32, #tpu.memory_space<vmem>>, %arg2: memref<128x256xbf16, #tpu.memory_space<vmem>>, %arg3: memref<1x256xf32, #tpu.memory_space<vmem>>, %arg4: memref<256x256xbf16, #tpu.memory_space<vmem>>, %arg5: memref<1x256xf32, #tpu.memory_space<vmem>>, %arg6: memref<256x256xbf16, #tpu.memory_space<vmem>>, %arg7: memref<1x256xf32, #tpu.memory_space<vmem>>, %arg8: memref<256x256xbf16, #tpu.memory_space<vmem>>, %arg9: memref<1x256xf32, #tpu.memory_space<vmem>>, %arg10: memref<1x256xf32, #tpu.memory_space<vmem>>, %arg11: memref<1x256xf32, #tpu.memory_space<vmem>>) attributes {dimension_semantics = [#tpu.dimension_semantics<parallel>], iteration_bounds = array<i64: 1>, scalar_prefetch = 0 : i64, scratch_operands = 0 : i64, tpu.core_type = #tpu.core_type<tc>, window_params = [{transform_indices = @transform_0, window_bounds = array<i64: 1, 128>}, {pipeline_mode = #tpu.pipeline_mode<synchronous>, transform_indices = @transform_1, window_bounds = array<i64: 128, 256>}, {pipeline_mode = #tpu.pipeline_mode<synchronous>, transform_indices = @transform_2, window_bounds = array<i64: 1, 256>}, {pipeline_mode = #tpu.pipeline_mode<synchronous>, transform_indices = @transform_3, window_bounds = array<i64: 256, 256>}, {pipeline_mode = #tpu.pipeline_mode<synchronous>, transform_indices = @transform_4, window_bounds = array<i64: 1, 256>}, {pipeline_mode = #tpu.pipeline_mode<synchronous>, transform_indices = @transform_5, window_bounds = array<i64: 256, 256>}, {pipeline_mode = #tpu.pipeline_mode<synchronous>, transform_indices = @transform_6, window_bounds = array<i64: 1, 256>}, {pipeline_mode = #tpu.pipeline_mode<synchronous>, transform_indices = @transform_7, window_bounds = array<i64: 256, 256>}, {pipeline_mode = #tpu.pipeline_mode<synchronous>, transform_indices = @transform_8, window_bounds = array<i64: 1, 256>}, {transform_indices = @transform_9, window_bounds = array<i64: 1, 256>}, {transform_indices = @transform_10, window_bounds = array<i64: 1, 256>}]} {
    %c0 = arith.constant 0 : index
    %c0_0 = arith.constant 0 : index
    %0 = vector.load %arg1[%c0, %c0_0] : memref<1x128xf32, #tpu.memory_space<vmem>>, vector<1x128xf32>
    %1 = arith.truncf %0 : vector<1x128xf32> to vector<1x128xbf16>
    %c0_1 = arith.constant 0 : index
    %c0_2 = arith.constant 0 : index
    %2 = vector.load %arg2[%c0_1, %c0_2] : memref<128x256xbf16, #tpu.memory_space<vmem>>, vector<128x256xbf16>
    %cst = arith.constant dense<0.000000e+00> : vector<1x256xf32>
    %3 = tpu.matmul %1, %2, %cst {dimension_numbers = #tpu.dot_dimension_numbers<[1], [0], [0], [1], [0, 0, 1, 1], [], []>} : vector<1x128xbf16>, vector<128x256xbf16>, vector<1x256xf32> -> vector<1x256xf32>
    %c0_3 = arith.constant 0 : index
    %c0_4 = arith.constant 0 : index
    %4 = vector.load %arg3[%c0_3, %c0_4] : memref<1x256xf32, #tpu.memory_space<vmem>>, vector<1x256xf32>
    %5 = arith.addf %3, %4 : vector<1x256xf32>
    %cst_5 = arith.constant 0.000000e+00 : f32
    %6 = vector.broadcast %cst_5 : f32 to vector<1x256xf32>
    %7 = arith.cmpf oge, %5, %6 : vector<1x256xf32>
    %cst_6 = arith.constant 0.00999999977 : f32
    %8 = vector.broadcast %cst_6 : f32 to vector<1x256xf32>
    %9 = arith.mulf %8, %5 : vector<1x256xf32>
    %10 = arith.select %7, %5, %9 : vector<1x256xi1>, vector<1x256xf32>
    %11 = arith.truncf %10 : vector<1x256xf32> to vector<1x256xbf16>
    %c0_7 = arith.constant 0 : index
    %c0_8 = arith.constant 0 : index
    %12 = vector.load %arg4[%c0_7, %c0_8] : memref<256x256xbf16, #tpu.memory_space<vmem>>, vector<256x256xbf16>
    %cst_9 = arith.constant dense<0.000000e+00> : vector<1x256xf32>
    %13 = tpu.matmul %11, %12, %cst_9 {dimension_numbers = #tpu.dot_dimension_numbers<[1], [0], [0], [1], [0, 0, 1, 1], [], []>} : vector<1x256xbf16>, vector<256x256xbf16>, vector<1x256xf32> -> vector<1x256xf32>
    %c0_10 = arith.constant 0 : index
    %c0_11 = arith.constant 0 : index
    %14 = vector.load %arg5[%c0_10, %c0_11] : memref<1x256xf32, #tpu.memory_space<vmem>>, vector<1x256xf32>
    %15 = arith.addf %13, %14 : vector<1x256xf32>
    %cst_12 = arith.constant 0.000000e+00 : f32
    %16 = vector.broadcast %cst_12 : f32 to vector<1x256xf32>
    %17 = arith.cmpf oge, %15, %16 : vector<1x256xf32>
    %cst_13 = arith.constant 0.00999999977 : f32
    %18 = vector.broadcast %cst_13 : f32 to vector<1x256xf32>
    %19 = arith.mulf %18, %15 : vector<1x256xf32>
    %20 = arith.select %17, %15, %19 : vector<1x256xi1>, vector<1x256xf32>
    %21 = arith.truncf %20 : vector<1x256xf32> to vector<1x256xbf16>
    %c0_14 = arith.constant 0 : index
    %c0_15 = arith.constant 0 : index
    %22 = vector.load %arg6[%c0_14, %c0_15] : memref<256x256xbf16, #tpu.memory_space<vmem>>, vector<256x256xbf16>
    %cst_16 = arith.constant dense<0.000000e+00> : vector<1x256xf32>
    %23 = tpu.matmul %21, %22, %cst_16 {dimension_numbers = #tpu.dot_dimension_numbers<[1], [0], [0], [1], [0, 0, 1, 1], [], []>} : vector<1x256xbf16>, vector<256x256xbf16>, vector<1x256xf32> -> vector<1x256xf32>
    %c0_17 = arith.constant 0 : index
    %c0_18 = arith.constant 0 : index
    %24 = vector.load %arg7[%c0_17, %c0_18] : memref<1x256xf32, #tpu.memory_space<vmem>>, vector<1x256xf32>
    %25 = arith.addf %23, %24 : vector<1x256xf32>
    %c0_19 = arith.constant 0 : index
    %c0_20 = arith.constant 0 : index
    %26 = vector.load %arg8[%c0_19, %c0_20] : memref<256x256xbf16, #tpu.memory_space<vmem>>, vector<256x256xbf16>
    %cst_21 = arith.constant dense<0.000000e+00> : vector<1x256xf32>
    %27 = tpu.matmul %21, %26, %cst_21 {dimension_numbers = #tpu.dot_dimension_numbers<[1], [0], [0], [1], [0, 0, 1, 1], [], []>} : vector<1x256xbf16>, vector<256x256xbf16>, vector<1x256xf32> -> vector<1x256xf32>
    %c0_22 = arith.constant 0 : index
    %c0_23 = arith.constant 0 : index
    %28 = vector.load %arg9[%c0_22, %c0_23] : memref<1x256xf32, #tpu.memory_space<vmem>>, vector<1x256xf32>
    %29 = arith.addf %27, %28 : vector<1x256xf32>
    %c0_24 = arith.constant 0 : index
    %c0_25 = arith.constant 0 : index
    %30 = vector.load %arg10[%c0_24, %c0_25] : memref<1x256xf32, #tpu.memory_space<vmem>>, vector<1x256xf32>
    tpu.vector_store %arg10[%c0_24, %c0_25], %25 {strides = array<i32>} : memref<1x256xf32, #tpu.memory_space<vmem>>, vector<1x256xf32>,
    %c0_26 = arith.constant 0 : index
    %c0_27 = arith.constant 0 : index
    %31 = vector.load %arg11[%c0_26, %c0_27] : memref<1x256xf32, #tpu.memory_space<vmem>>, vector<1x256xf32>
    tpu.vector_store %arg11[%c0_26, %c0_27], %29 {strides = array<i32>} : memref<1x256xf32, #tpu.memory_space<vmem>>, vector<1x256xf32>,
    return
  }
  func.func @transform_0(%arg0: i32) -> (i32, i32) {
    %c0_i32 = arith.constant 0 : i32
    %c0_i32_0 = arith.constant 0 : i32
    return %arg0, %c0_i32 : i32, i32
  }
  func.func @transform_1(%arg0: i32) -> (i32, i32) {
    %c0_i32 = arith.constant 0 : i32
    %c0_i32_0 = arith.constant 0 : i32
    %c0_i32_1 = arith.constant 0 : i32
    return %c0_i32, %c0_i32_0 : i32, i32
  }
  func.func @transform_2(%arg0: i32) -> (i32, i32) {
    %c0_i32 = arith.constant 0 : i32
    %c0_i32_0 = arith.constant 0 : i32
    %c0_i32_1 = arith.constant 0 : i32
    return %c0_i32, %c0_i32_0 : i32, i32
  }
  func.func @transform_3(%arg0: i32) -> (i32, i32) {
    %c0_i32 = arith.constant 0 : i32
    %c0_i32_0 = arith.constant 0 : i32
    %c0_i32_1 = arith.constant 0 : i32
    return %c0_i32, %c0_i32_0 : i32, i32
  }
  func.func @transform_4(%arg0: i32) -> (i32, i32) {
    %c0_i32 = arith.constant 0 : i32
    %c0_i32_0 = arith.constant 0 : i32
    %c0_i32_1 = arith.constant 0 : i32
    return %c0_i32, %c0_i32_0 : i32, i32
  }
  func.func @transform_5(%arg0: i32) -> (i32, i32) {
    %c0_i32 = arith.constant 0 : i32
    %c0_i32_0 = arith.constant 0 : i32
    %c0_i32_1 = arith.constant 0 : i32
    return %c0_i32, %c0_i32_0 : i32, i32
  }
  func.func @transform_6(%arg0: i32) -> (i32, i32) {
    %c0_i32 = arith.constant 0 : i32
    %c0_i32_0 = arith.constant 0 : i32
    %c0_i32_1 = arith.constant 0 : i32
    return %c0_i32, %c0_i32_0 : i32, i32
  }
  func.func @transform_7(%arg0: i32) -> (i32, i32) {
    %c0_i32 = arith.constant 0 : i32
    %c0_i32_0 = arith.constant 0 : i32
    %c0_i32_1 = arith.constant 0 : i32
    return %c0_i32, %c0_i32_0 : i32, i32
  }
  func.func @transform_8(%arg0: i32) -> (i32, i32) {
    %c0_i32 = arith.constant 0 : i32
    %c0_i32_0 = arith.constant 0 : i32
    %c0_i32_1 = arith.constant 0 : i32
    return %c0_i32, %c0_i32_0 : i32, i32
  }
  func.func @transform_9(%arg0: i32) -> (i32, i32) {
    %c0_i32 = arith.constant 0 : i32
    %c0_i32_0 = arith.constant 0 : i32
    return %arg0, %c0_i32 : i32, i32
  }
  func.func @transform_10(%arg0: i32) -> (i32, i32) {
    %c0_i32 = arith.constant 0 : i32
    %c0_i32_0 = arith.constant 0 : i32
    return %arg0, %c0_i32 : i32, i32
  }
}

</mosaic_0001>

<llo_original>
// kernel: tpu_custom_call.1
$region0: #{tpu_custom_call.1}
  #allocation0 [shape = 'u32[]', space=smem, size = 0x4, offset = 0x4, fixed_abs, tag = 'smem constant byte address 0x4 - core index']
  #allocation1 [shape = 'u32[72,128]{1,0:T(1,128)}', space=vmem, size = 0x9000, scoped, tag = 'internal scratch']
  %s0 = inlined_call_operand.hbm [shape: f32[1,128], index: 0, kind: input, shape index: {}]
  %s1 = inlined_call_operand.hbm [shape: bf16[128,256], index: 1, kind: input, shape index: {}]
  %s2 = inlined_call_operand.hbm [shape: f32[1,256], index: 2, kind: input, shape index: {}]
  %s3 = inlined_call_operand.hbm [shape: bf16[256,256], index: 3, kind: input, shape index: {}]
  %s4 = inlined_call_operand.vmem [shape: f32[1,256], index: 4, kind: input, shape index: {}]
  %s5 = inlined_call_operand.hbm [shape: bf16[256,256], index: 5, kind: input, shape index: {}]
  %s6 = inlined_call_operand.vmem [shape: f32[1,256], index: 6, kind: input, shape index: {}]
  %s7 = inlined_call_operand.hbm [shape: bf16[256,256], index: 7, kind: input, shape index: {}]
  %s8 = inlined_call_operand.vmem [shape: f32[1,256], index: 8, kind: input, shape index: {}]
  %s9 = inlined_call_operand.hbm [shape: f32[1,256], index: 9, kind: output, shape index: {0}]
  %s10 = inlined_call_operand.hbm [shape: f32[1,256], index: 10, kind: output, shape index: {1}]
  %11 = xla_tuple %s9, %s10
  %s12 = sld [smem:[#allocation0]]
  $region78: #{tpu_custom_call.1} parent=0
    _
  %s14 = ssub.s32 1, %s12
  %s15 = scalar_select 0, %s14, %s12
  $region1: #{tpu_custom_call.1} parent=0
    #allocation2 [shape = 'u8[512]{0}', space=vmem, size = 0x400, scoped, tag = 'input window, operand 0, single buffered']
    #allocation3 [shape = 's32[1]{0}', space=sflag, size = 0x4, scoped, tag = 'scoped memory for tpu_custom_call.1']
    #allocation4 [shape = 's32[1]{0}', space=sflag, size = 0x4, scoped, tag = 'scoped memory for tpu_custom_call.1']
    #allocation5 [shape = 'u8[65536]{0}', space=vmem, size = 0x10000, scoped, tag = 'input window, operand 1, single buffered']
    #allocation6 [shape = 's32[1]{0}', space=sflag, size = 0x4, scoped, tag = 'scoped memory for tpu_custom_call.1']
    #allocation7 [shape = 'u8[1024]{0}', space=vmem, size = 0x400, scoped, tag = 'input window, operand 2, single buffered']
    #allocation8 [shape = 'u8[131072]{0}', space=vmem, size = 0x20000, scoped, tag = 'input window, operand 3, single buffered']
    #allocation9 [shape = 's32[1]{0}', space=sflag, size = 0x4, scoped, tag = 'scoped memory for tpu_custom_call.1']
    #allocation10 [shape = 'u8[131072]{0}', space=vmem, size = 0x20000, scoped, tag = 'input window, operand 5, single buffered']
    #allocation11 [shape = 'u8[131072]{0}', space=vmem, size = 0x20000, scoped, tag = 'input window, operand 7, single buffered']
    #allocation12 [shape = 's32[1]{0}', space=sflag, size = 0x4, scoped, tag = 'scoped memory for tpu_custom_call.1']
    #allocation13 [shape = 'u8[1024]{0}', space=vmem, size = 0x400, scoped, tag = 'output window, operand 0, single buffered']
    #allocation14 [shape = 'u8[1024]{0}', space=vmem, size = 0x400, scoped, tag = 'output window, operand 1, single buffered']
    #allocation15 [shape = 's32[1]{0}', space=sflag, size = 0x4, scoped, tag = 'scoped memory for tpu_custom_call.1']
    %16 = vsyncpa [#allocation3], 0
    %17 = vsyncpa [#allocation6], 0
    %18 = vsyncpa [#allocation9], 0
    %19 = vsyncpa [#allocation12], 0
    %20 = vsyncpa [#allocation4], 0
    %21 = vsyncpa [#allocation15], 0
    // Predicated region
    $region2: #{tpu_custom_call.1} parent=1 // pred_check
      _
    $region3: #{tpu_custom_call.1} parent=1 // pred_check_branch
      %23 = sbr.rel (0) target = $region5
    $region4: #{tpu_custom_call.1} parent=1 // pred_region
      %25 = vsyncadd [#allocation3], 0
      %s27 = sshll.u32 %s0, 4
      %s28 = int_to_ptr.hbm [resolvable:$true] %s27
      %s29 = sshll.u32 [#allocation2], 4
      %s30 = int_to_ptr.vmem [resolvable:$true] %s29
      %32 = dma.hbm_to_vmem [thread:$0]  %s28, 16, %s30, [#allocation3]
    $region5: #{tpu_custom_call.1} parent=1 // pred_fallthru
      _
    // Predicated region
    $region6: #{tpu_custom_call.1} parent=1 // pred_check
      _
    $region7: #{tpu_custom_call.1} parent=1 // pred_check_branch
      %34 = sbr.rel (0) target = $region9
    $region8: #{tpu_custom_call.1} parent=1 // pred_region
      %36 = vsyncadd [#allocation6], 0
      %s37 = sshll.u32 %s1, 4
      %s38 = int_to_ptr.hbm [resolvable:$true] %s37
      %s39 = sshll.u32 [#allocation5], 4
      %s40 = int_to_ptr.vmem [resolvable:$true] %s39
      %45 = dma.hbm_to_vmem [thread:$0]  %s38, 2048, %s40, [#allocation6], 128, 128, 8
    $region9: #{tpu_custom_call.1} parent=1 // pred_fallthru
      _
    // Predicated region
    $region10: #{tpu_custom_call.1} parent=1 // pred_check
      _
    $region11: #{tpu_custom_call.1} parent=1 // pred_check_branch
      %47 = sbr.rel (0) target = $region13
    $region12: #{tpu_custom_call.1} parent=1 // pred_region
      %49 = vsyncadd [#allocation6], 0
      %s51 = sshll.u32 %s2, 4
      %s52 = int_to_ptr.hbm [resolvable:$true] %s51
      %s53 = sshll.u32 [#allocation7], 4
      %s54 = int_to_ptr.vmem [resolvable:$true] %s53
      %56 = dma.hbm_to_vmem [thread:$0]  %s52, 32, %s54, [#allocation6]
    $region13: #{tpu_custom_call.1} parent=1 // pred_fallthru
      _
    // Predicated region
    $region14: #{tpu_custom_call.1} parent=1 // pred_check
      _
    $region15: #{tpu_custom_call.1} parent=1 // pred_check_branch
      %58 = sbr.rel (0) target = $region17
    $region16: #{tpu_custom_call.1} parent=1 // pred_region
      %60 = vsyncadd [#allocation9], 0
      %s61 = sshll.u32 %s3, 4
      %s62 = int_to_ptr.hbm [resolvable:$true] %s61
      %s63 = sshll.u32 [#allocation8], 4
      %s64 = int_to_ptr.vmem [resolvable:$true] %s63
      %69 = dma.hbm_to_vmem [thread:$0]  %s62, 4096, %s64, [#allocation9], 128, 128, 8
    $region17: #{tpu_custom_call.1} parent=1 // pred_fallthru
      _
    // Predicated region
    $region18: #{tpu_custom_call.1} parent=1 // pred_check
      _
    $region19: #{tpu_custom_call.1} parent=1 // pred_check_branch
      %71 = sbr.rel (0) target = $region21
    $region20: #{tpu_custom_call.1} parent=1 // pred_region
      _
    $region21: #{tpu_custom_call.1} parent=1 // pred_fallthru
      _
    // Predicated region
    $region22: #{tpu_custom_call.1} parent=1 // pred_check
      _
    $region23: #{tpu_custom_call.1} parent=1 // pred_check_branch
      %73 = sbr.rel (0) target = $region25
    $region24: #{tpu_custom_call.1} parent=1 // pred_region
      %75 = vsyncadd [#allocation9], 0
      %s76 = sshll.u32 %s5, 4
      %s77 = int_to_ptr.hbm [resolvable:$true] %s76
      %s78 = sshll.u32 [#allocation10], 4
      %s79 = int_to_ptr.vmem [resolvable:$true] %s78
      %84 = dma.hbm_to_vmem [thread:$0]  %s77, 4096, %s79, [#allocation9], 128, 128, 8
    $region25: #{tpu_custom_call.1} parent=1 // pred_fallthru
      _
    // Predicated region
    $region26: #{tpu_custom_call.1} parent=1 // pred_check
      _
    $region27: #{tpu_custom_call.1} parent=1 // pred_check_branch
      %86 = sbr.rel (0) target = $region29
    $region28: #{tpu_custom_call.1} parent=1 // pred_region
      _
    $region29: #{tpu_custom_call.1} parent=1 // pred_fallthru
      _
    // Predicated region
    $region30: #{tpu_custom_call.1} parent=1 // pred_check
      _
    $region31: #{tpu_custom_call.1} parent=1 // pred_check_branch
      %88 = sbr.rel (0) target = $region33
    $region32: #{tpu_custom_call.1} parent=1 // pred_region
      %90 = vsyncadd [#allocation12], 0
      %s91 = sshll.u32 %s7, 4
      %s92 = int_to_ptr.hbm [resolvable:$true] %s91
      %s93 = sshll.u32 [#allocation11], 4
      %s94 = int_to_ptr.vmem [resolvable:$true] %s93
      %99 = dma.hbm_to_vmem [thread:$0]  %s92, 4096, %s94, [#allocation12], 128, 128, 8
    $region33: #{tpu_custom_call.1} parent=1 // pred_fallthru
      _
    // Predicated region
    $region34: #{tpu_custom_call.1} parent=1 // pred_check
      _
    $region35: #{tpu_custom_call.1} parent=1 // pred_check_branch
      %101 = sbr.rel (0) target = $region37
    $region36: #{tpu_custom_call.1} parent=1 // pred_region
      _
    $region37: #{tpu_custom_call.1} parent=1 // pred_fallthru
      _
    // Predicated region
    $region38: #{tpu_custom_call.1} parent=1 // pred_check
      _
    $region39: #{tpu_custom_call.1} parent=1 // pred_check_branch
      %103 = sbr.rel (0) target = $region41
    $region40: #{tpu_custom_call.1} parent=1 // pred_region
      %105 = dma.done [#allocation3], 16
    $region41: #{tpu_custom_call.1} parent=1 // pred_fallthru
      _
    // Predicated region
    $region42: #{tpu_custom_call.1} parent=1 // pred_check
      _
    $region43: #{tpu_custom_call.1} parent=1 // pred_check_branch
      %107 = sbr.rel (0) target = $region45
    $region44: #{tpu_custom_call.1} parent=1 // pred_region
      %109 = dma.done [#allocation6], 2048
    $region45: #{tpu_custom_call.1} parent=1 // pred_fallthru
      _
    // Predicated region
    $region46: #{tpu_custom_call.1} parent=1 // pred_check
      _
    $region47: #{tpu_custom_call.1} parent=1 // pred_check_branch
      %111 = sbr.rel (0) target = $region49
    $region48: #{tpu_custom_call.1} parent=1 // pred_region
      %113 = dma.done [#allocation6], 32
    $region49: #{tpu_custom_call.1} parent=1 // pred_fallthru
      _
    // Predicated region
    $region50: #{tpu_custom_call.1} parent=1 // pred_check
      _
    $region51: #{tpu_custom_call.1} parent=1 // pred_check_branch
      %115 = sbr.rel (0) target = $region53
    $region52: #{tpu_custom_call.1} parent=1 // pred_region
      %117 = dma.done [#allocation9], 4096
    $region53: #{tpu_custom_call.1} parent=1 // pred_fallthru
      _
    // Predicated region
    $region54: #{tpu_custom_call.1} parent=1 // pred_check
      _
    $region55: #{tpu_custom_call.1} parent=1 // pred_check_branch
      %119 = sbr.rel (0) target = $region57
    $region56: #{tpu_custom_call.1} parent=1 // pred_region
      %121 = dma.done [#allocation9], 4096
    $region57: #{tpu_custom_call.1} parent=1 // pred_fallthru
      _
    // Predicated region
    $region58: #{tpu_custom_call.1} parent=1 // pred_check
      _
    $region59: #{tpu_custom_call.1} parent=1 // pred_check_branch
      %123 = sbr.rel (0) target = $region61
    $region60: #{tpu_custom_call.1} parent=1 // pred_region
      %125 = dma.done [#allocation12], 4096
    $region61: #{tpu_custom_call.1} parent=1 // pred_fallthru
      _
    %v126 = vld [vmem:[#allocation2] sm:$0x1]
    %v127 = vpack.c.bf16 %v126, %v126
    %v128 = vld [vmem:[#allocation5] sm:$0xff]
    %v129 = vld [vmem:[#allocation5 + $0x8] sm:$0xff]
    %v130 = vld [vmem:[#allocation5 + $0x10] sm:$0xff]
    %v131 = vld [vmem:[#allocation5 + $0x18] sm:$0xff]
    %v132 = vld [vmem:[#allocation5 + $0x20] sm:$0xff]
    %v133 = vld [vmem:[#allocation5 + $0x28] sm:$0xff]
    %v134 = vld [vmem:[#allocation5 + $0x30] sm:$0xff]
    %v135 = vld [vmem:[#allocation5 + $0x38] sm:$0xff]
    %v136 = vld [vmem:[#allocation5 + $0x40] sm:$0xff]
    %v137 = vld [vmem:[#allocation5 + $0x48] sm:$0xff]
    %v138 = vld [vmem:[#allocation5 + $0x50] sm:$0xff]
    %v139 = vld [vmem:[#allocation5 + $0x58] sm:$0xff]
    %v140 = vld [vmem:[#allocation5 + $0x60] sm:$0xff]
    %v141 = vld [vmem:[#allocation5 + $0x68] sm:$0xff]
    %v142 = vld [vmem:[#allocation5 + $0x70] sm:$0xff]
    %v143 = vld [vmem:[#allocation5 + $0x78] sm:$0xff]
    %v144 = vld [vmem:[#allocation7] sm:$0x3]
    %v161 = vunpack.c.l.b16 %v128
    %v162 = vunpack.c.h.b16 %v128
    %v163 = vunpack.c.l.b16 %v129
    %v164 = vunpack.c.h.b16 %v129
    %v165 = vunpack.c.l.b16 %v130
    %v166 = vunpack.c.h.b16 %v130
    %v167 = vunpack.c.l.b16 %v131
    %v168 = vunpack.c.h.b16 %v131
    %v169 = vunpack.c.l.b16 %v132
    %v170 = vunpack.c.h.b16 %v132
    %v171 = vunpack.c.l.b16 %v133
    %v172 = vunpack.c.h.b16 %v133
    %v173 = vunpack.c.l.b16 %v134
    %v174 = vunpack.c.h.b16 %v134
    %v175 = vunpack.c.l.b16 %v135
    %v176 = vunpack.c.h.b16 %v135
    %v177 = vunpack.c.l.b16 %v136
    %v178 = vunpack.c.h.b16 %v136
    %v179 = vunpack.c.l.b16 %v137
    %v180 = vunpack.c.h.b16 %v137
    %v181 = vunpack.c.l.b16 %v138
    %v182 = vunpack.c.h.b16 %v138
    %v183 = vunpack.c.l.b16 %v139
    %v184 = vunpack.c.h.b16 %v139
    %v185 = vunpack.c.l.b16 %v140
    %v186 = vunpack.c.h.b16 %v140
    %v187 = vunpack.c.l.b16 %v141
    %v188 = vunpack.c.h.b16 %v141
    %v189 = vunpack.c.l.b16 %v142
    %v190 = vunpack.c.h.b16 %v142
    %v191 = vunpack.c.l.b16 %v143
    %v192 = vunpack.c.h.b16 %v143
    %v193 = vpack.c.b16 %v163, %v161
    %v194 = vpack.c.b16 %v164, %v162
    %v195 = vpack.c.b16 %v167, %v165
    %v196 = vpack.c.b16 %v168, %v166
    %v197 = vpack.c.b16 %v171, %v169
    %v198 = vpack.c.b16 %v172, %v170
    %v199 = vpack.c.b16 %v175, %v173
    %v200 = vpack.c.b16 %v176, %v174
    %v201 = vpack.c.b16 %v179, %v177
    %v202 = vpack.c.b16 %v180, %v178
    %v203 = vpack.c.b16 %v183, %v181
    %v204 = vpack.c.b16 %v184, %v182
    %v205 = vpack.c.b16 %v187, %v185
    %v206 = vpack.c.b16 %v188, %v186
    %v207 = vpack.c.b16 %v191, %v189
    %v208 = vpack.c.b16 %v192, %v190
    %v226 = vperm.slane %v144, 0
    %v227 = vperm.slane %v144, 1
    %230 = vmatpush.bf16.msra.mxu0 %v207
    %231 = vmatpush.bf16.msra.mxu0 %v205
    %232 = vmatpush.bf16.msra.mxu0 %v203
    %233 = vmatpush.bf16.msra.mxu0 %v201
    %234 = vmatpush.bf16.msra.mxu0 %v199
    %235 = vmatpush.bf16.msra.mxu0 %v197
    %236 = vmatpush.bf16.msra.mxu0 %v195
    %237 = vmatpush.bf16.msra.mxu0 %v193
    %238 = vmatmul.bf16.gmra.mxu0 %v127
    %v239 = vpop.f32.mrf.mxu0
    %v240 = vadd.f32 %v226, %v239
    %v241 = vpop.f32.mrf.mxu0
    %242 = vdwg.mxu0
    %243 = vmatpush.bf16.msra.mxu0 %v208
    %244 = vmatpush.bf16.msra.mxu0 %v206
    %245 = vmatpush.bf16.msra.mxu0 %v204
    %246 = vmatpush.bf16.msra.mxu0 %v202
    %247 = vmatpush.bf16.msra.mxu0 %v200
    %248 = vmatpush.bf16.msra.mxu0 %v198
    %249 = vmatpush.bf16.msra.mxu0 %v196
    %250 = vmatpush.bf16.msra.mxu0 %v194
    %251 = vmatmul.bf16.gmra.mxu0 %v127
    %v252 = vpop.f32.mrf.mxu0
    %v253 = vadd.f32 %v227, %v252
    %v254 = vpop.f32.mrf.mxu0
    %255 = vdwg.mxu0
    %vm256 = vcmp.ge.f32.partialorder %v240, 0.0
    %vm257 = vcmp.ge.f32.partialorder %v253, 0.0
    %v258 = vmul.f32 %v240, 0.01
    %v259 = vmul.f32 %v253, 0.01
    %v260 = vsel %vm256, %v240, %v258
    %v261 = vsel %vm257, %v253, %v259
    %v262 = vpack.c.bf16 %v260, %v260
    %v263 = vpack.c.bf16 %v261, %v261
    %v264 = vld [vmem:[#allocation8] sm:$0xff]
    %v265 = vld [vmem:[#allocation8 + $0x8] sm:$0xff]
    %v266 = vld [vmem:[#allocation8 + $0x10] sm:$0xff]
    %v267 = vld [vmem:[#allocation8 + $0x18] sm:$0xff]
    %v268 = vld [vmem:[#allocation8 + $0x20] sm:$0xff]
    %v269 = vld [vmem:[#allocation8 + $0x28] sm:$0xff]
    %v270 = vld [vmem:[#allocation8 + $0x30] sm:$0xff]
    %v271 = vld [vmem:[#allocation8 + $0x38] sm:$0xff]
    %v272 = vld [vmem:[#allocation8 + $0x40] sm:$0xff]
    %v273 = vld [vmem:[#allocation8 + $0x48] sm:$0xff]
    %v274 = vld [vmem:[#allocation8 + $0x50] sm:$0xff]
    %v275 = vld [vmem:[#allocation8 + $0x58] sm:$0xff]
    %v276 = vld [vmem:[#allocation8 + $0x60] sm:$0xff]
    %v277 = vld [vmem:[#allocation8 + $0x68] sm:$0xff]
    %v278 = vld [vmem:[#allocation8 + $0x70] sm:$0xff]
    %v279 = vld [vmem:[#allocation8 + $0x78] sm:$0xff]
    %v280 = vld [vmem:[#allocation8 + $0x80] sm:$0xff]
    %v281 = vld [vmem:[#allocation8 + $0x88] sm:$0xff]
    %v282 = vld [vmem:[#allocation8 + $0x90] sm:$0xff]
    %v283 = vld [vmem:[#allocation8 + $0x98] sm:$0xff]
    %v284 = vld [vmem:[#allocation8 + $0xa0] sm:$0xff]
    %v285 = vld [vmem:[#allocation8 + $0xa8] sm:$0xff]
    %v286 = vld [vmem:[#allocation8 + $0xb0] sm:$0xff]
    %v287 = vld [vmem:[#allocation8 + $0xb8] sm:$0xff]
    %v288 = vld [vmem:[#allocation8 + $0xc0] sm:$0xff]
    %v289 = vld [vmem:[#allocation8 + $0xc8] sm:$0xff]
    %v290 = vld [vmem:[#allocation8 + $0xd0] sm:$0xff]
    %v291 = vld [vmem:[#allocation8 + $0xd8] sm:$0xff]
    %v292 = vld [vmem:[#allocation8 + $0xe0] sm:$0xff]
    %v293 = vld [vmem:[#allocation8 + $0xe8] sm:$0xff]
    %v294 = vld [vmem:[#allocation8 + $0xf0] sm:$0xff]
    %v295 = vld [vmem:[#allocation8 + $0xf8] sm:$0xff]
    %v296 = vld [vmem:[%s4] sm:$0x3]
    %v329 = vunpack.c.l.b16 %v264
    %v330 = vunpack.c.h.b16 %v264
    %v331 = vunpack.c.l.b16 %v265
    %v332 = vunpack.c.h.b16 %v265
    %v333 = vunpack.c.l.b16 %v266
    %v334 = vunpack.c.h.b16 %v266
    %v335 = vunpack.c.l.b16 %v267
    %v336 = vunpack.c.h.b16 %v267
    %v337 = vunpack.c.l.b16 %v268
    %v338 = vunpack.c.h.b16 %v268
    %v339 = vunpack.c.l.b16 %v269
    %v340 = vunpack.c.h.b16 %v269
    %v341 = vunpack.c.l.b16 %v270
    %v342 = vunpack.c.h.b16 %v270
    %v343 = vunpack.c.l.b16 %v271
    %v344 = vunpack.c.h.b16 %v271
    %v345 = vunpack.c.l.b16 %v272
    %v346 = vunpack.c.h.b16 %v272
    %v347 = vunpack.c.l.b16 %v273
    %v348 = vunpack.c.h.b16 %v273
    %v349 = vunpack.c.l.b16 %v274
    %v350 = vunpack.c.h.b16 %v274
    %v351 = vunpack.c.l.b16 %v275
    %v352 = vunpack.c.h.b16 %v275
    %v353 = vunpack.c.l.b16 %v276
    %v354 = vunpack.c.h.b16 %v276
    %v355 = vunpack.c.l.b16 %v277
    %v356 = vunpack.c.h.b16 %v277
    %v357 = vunpack.c.l.b16 %v278
    %v358 = vunpack.c.h.b16 %v278
    %v359 = vunpack.c.l.b16 %v279
    %v360 = vunpack.c.h.b16 %v279
    %v361 = vunpack.c.l.b16 %v280
    %v362 = vunpack.c.h.b16 %v280
    %v363 = vunpack.c.l.b16 %v281
    %v364 = vunpack.c.h.b16 %v281
    %v365 = vunpack.c.l.b16 %v282
    %v366 = vunpack.c.h.b16 %v282
    %v367 = vunpack.c.l.b16 %v283
    %v368 = vunpack.c.h.b16 %v283
    %v369 = vunpack.c.l.b16 %v284
    %v370 = vunpack.c.h.b16 %v284
    %v371 = vunpack.c.l.b16 %v285
    %v372 = vunpack.c.h.b16 %v285
    %v373 = vunpack.c.l.b16 %v286
    %v374 = vunpack.c.h.b16 %v286
    %v375 = vunpack.c.l.b16 %v287
    %v376 = vunpack.c.h.b16 %v287
    %v377 = vunpack.c.l.b16 %v288
    %v378 = vunpack.c.h.b16 %v288
    %v379 = vunpack.c.l.b16 %v289
    %v380 = vunpack.c.h.b16 %v289
    %v381 = vunpack.c.l.b16 %v290
    %v382 = vunpack.c.h.b16 %v290
    %v383 = vunpack.c.l.b16 %v291
    %v384 = vunpack.c.h.b16 %v291
    %v385 = vunpack.c.l.b16 %v292
    %v386 = vunpack.c.h.b16 %v292
    %v387 = vunpack.c.l.b16 %v293
    %v388 = vunpack.c.h.b16 %v293
    %v389 = vunpack.c.l.b16 %v294
    %v390 = vunpack.c.h.b16 %v294
    %v391 = vunpack.c.l.b16 %v295
    %v392 = vunpack.c.h.b16 %v295
    %v393 = vpack.c.b16 %v331, %v329
    %v394 = vpack.c.b16 %v332, %v330
    %v395 = vpack.c.b16 %v335, %v333
    %v396 = vpack.c.b16 %v336, %v334
    %v397 = vpack.c.b16 %v339, %v337
    %v398 = vpack.c.b16 %v340, %v338
    %v399 = vpack.c.b16 %v343, %v341
    %v400 = vpack.c.b16 %v344, %v342
    %v401 = vpack.c.b16 %v347, %v345
    %v402 = vpack.c.b16 %v348, %v346
    %v403 = vpack.c.b16 %v351, %v349
    %v404 = vpack.c.b16 %v352, %v350
    %v405 = vpack.c.b16 %v355, %v353
    %v406 = vpack.c.b16 %v356, %v354
    %v407 = vpack.c.b16 %v359, %v357
    %v408 = vpack.c.b16 %v360, %v358
    %v409 = vpack.c.b16 %v363, %v361
    %v410 = vpack.c.b16 %v364, %v362
    %v411 = vpack.c.b16 %v367, %v365
    %v412 = vpack.c.b16 %v368, %v366
    %v413 = vpack.c.b16 %v371, %v369
    %v414 = vpack.c.b16 %v372, %v370
    %v415 = vpack.c.b16 %v375, %v373
    %v416 = vpack.c.b16 %v376, %v374
    %v417 = vpack.c.b16 %v379, %v377
    %v418 = vpack.c.b16 %v380, %v378
    %v419 = vpack.c.b16 %v383, %v381
    %v420 = vpack.c.b16 %v384, %v382
    %v421 = vpack.c.b16 %v387, %v385
    %v422 = vpack.c.b16 %v388, %v386
    %v423 = vpack.c.b16 %v391, %v389
    %v424 = vpack.c.b16 %v392, %v390
    %v458 = vperm.slane %v296, 0
    %v459 = vperm.slane %v296, 1
    %462 = vmatpush.bf16.msra.mxu0 %v407
    %463 = vmatpush.bf16.msra.mxu0 %v405
    %464 = vmatpush.bf16.msra.mxu0 %v403
    %465 = vmatpush.bf16.msra.mxu0 %v401
    %466 = vmatpush.bf16.msra.mxu0 %v399
    %467 = vmatpush.bf16.msra.mxu0 %v397
    %468 = vmatpush.bf16.msra.mxu0 %v395
    %469 = vmatpush.bf16.msra.mxu0 %v393
    %470 = vmatmul.bf16.gmra.mxu0 %v262
    %v471 = vpop.f32.mrf.mxu0
    %v472 = vadd.f32 %v458, %v471
    %v473 = vpop.f32.mrf.mxu0
    %474 = vdwg.mxu0
    %475 = vmatpush.bf16.msra.mxu0 %v423
    %476 = vmatpush.bf16.msra.mxu0 %v421
    %477 = vmatpush.bf16.msra.mxu0 %v419
    %478 = vmatpush.bf16.msra.mxu0 %v417
    %479 = vmatpush.bf16.msra.mxu0 %v415
    %480 = vmatpush.bf16.msra.mxu0 %v413
    %481 = vmatpush.bf16.msra.mxu0 %v411
    %482 = vmatpush.bf16.msra.mxu0 %v409
    %483 = vmatmul.bf16.gmra.mxu0 %v263
    %v484 = vpop.f32.mrf.mxu0
    %v485 = vadd.f32 %v472, %v484
    %v486 = vpop.f32.mrf.mxu0
    %487 = vdwg.mxu0
    %488 = vmatpush.bf16.msra.mxu0 %v408
    %489 = vmatpush.bf16.msra.mxu0 %v406
    %490 = vmatpush.bf16.msra.mxu0 %v404
    %491 = vmatpush.bf16.msra.mxu0 %v402
    %492 = vmatpush.bf16.msra.mxu0 %v400
    %493 = vmatpush.bf16.msra.mxu0 %v398
    %494 = vmatpush.bf16.msra.mxu0 %v396
    %495 = vmatpush.bf16.msra.mxu0 %v394
    %496 = vmatmul.bf16.gmra.mxu0 %v262
    %v497 = vpop.f32.mrf.mxu0
    %v498 = vadd.f32 %v459, %v497
    %v499 = vpop.f32.mrf.mxu0
    %500 = vdwg.mxu0
    %501 = vmatpush.bf16.msra.mxu0 %v424
    %502 = vmatpush.bf16.msra.mxu0 %v422
    %503 = vmatpush.bf16.msra.mxu0 %v420
    %504 = vmatpush.bf16.msra.mxu0 %v418
    %505 = vmatpush.bf16.msra.mxu0 %v416
    %506 = vmatpush.bf16.msra.mxu0 %v414
    %507 = vmatpush.bf16.msra.mxu0 %v412
    %508 = vmatpush.bf16.msra.mxu0 %v410
    %509 = vmatmul.bf16.gmra.mxu0 %v263
    %v510 = vpop.f32.mrf.mxu0
    %v511 = vadd.f32 %v498, %v510
    %v512 = vpop.f32.mrf.mxu0
    %513 = vdwg.mxu0
    %vm514 = vcmp.ge.f32.partialorder %v485, 0.0
    %vm515 = vcmp.ge.f32.partialorder %v511, 0.0
    %v516 = vmul.f32 %v485, 0.01
    %v517 = vmul.f32 %v511, 0.01
    %v518 = vsel %vm514, %v485, %v516
    %v519 = vsel %vm515, %v511, %v517
    %v520 = vpack.c.bf16 %v518, %v518
    %v521 = vpack.c.bf16 %v519, %v519
    %v522 = vld [vmem:[#allocation10] sm:$0xff]
    %v523 = vld [vmem:[#allocation10 + $0x8] sm:$0xff]
    %v524 = vld [vmem:[#allocation10 + $0x10] sm:$0xff]
    %v525 = vld [vmem:[#allocation10 + $0x18] sm:$0xff]
    %v526 = vld [vmem:[#allocation10 + $0x20] sm:$0xff]
    %v527 = vld [vmem:[#allocation10 + $0x28] sm:$0xff]
    %v528 = vld [vmem:[#allocation10 + $0x30] sm:$0xff]
    %v529 = vld [vmem:[#allocation10 + $0x38] sm:$0xff]
    %v530 = vld [vmem:[#allocation10 + $0x40] sm:$0xff]
    %v531 = vld [vmem:[#allocation10 + $0x48] sm:$0xff]
    %v532 = vld [vmem:[#allocation10 + $0x50] sm:$0xff]
    %v533 = vld [vmem:[#allocation10 + $0x58] sm:$0xff]
    %v534 = vld [vmem:[#allocation10 + $0x60] sm:$0xff]
    %v535 = vld [vmem:[#allocation10 + $0x68] sm:$0xff]
    %v536 = vld [vmem:[#allocation10 + $0x70] sm:$0xff]
    %v537 = vld [vmem:[#allocation10 + $0x78] sm:$0xff]
    %v538 = vld [vmem:[#allocation10 + $0x80] sm:$0xff]
    %v539 = vld [vmem:[#allocation10 + $0x88] sm:$0xff]
    %v540 = vld [vmem:[#allocation10 + $0x90] sm:$0xff]
    %v541 = vld [vmem:[#allocation10 + $0x98] sm:$0xff]
    %v542 = vld [vmem:[#allocation10 + $0xa0] sm:$0xff]
    %v543 = vld [vmem:[#allocation10 + $0xa8] sm:$0xff]
    %v544 = vld [vmem:[#allocation10 + $0xb0] sm:$0xff]
    %v545 = vld [vmem:[#allocation10 + $0xb8] sm:$0xff]
    %v546 = vld [vmem:[#allocation10 + $0xc0] sm:$0xff]
    %v547 = vld [vmem:[#allocation10 + $0xc8] sm:$0xff]
    %v548 = vld [vmem:[#allocation10 + $0xd0] sm:$0xff]
    %v549 = vld [vmem:[#allocation10 + $0xd8] sm:$0xff]
    %v550 = vld [vmem:[#allocation10 + $0xe0] sm:$0xff]
    %v551 = vld [vmem:[#allocation10 + $0xe8] sm:$0xff]
    %v552 = vld [vmem:[#allocation10 + $0xf0] sm:$0xff]
    %v553 = vld [vmem:[#allocation10 + $0xf8] sm:$0xff]
    %v554 = vld [vmem:[%s6] sm:$0x3]
    %v587 = vunpack.c.l.b16 %v522
    %v588 = vunpack.c.h.b16 %v522
    %v589 = vunpack.c.l.b16 %v523
    %v590 = vunpack.c.h.b16 %v523
    %v591 = vunpack.c.l.b16 %v524
    %v592 = vunpack.c.h.b16 %v524
    %v593 = vunpack.c.l.b16 %v525
    %v594 = vunpack.c.h.b16 %v525
    %v595 = vunpack.c.l.b16 %v526
    %v596 = vunpack.c.h.b16 %v526
    %v597 = vunpack.c.l.b16 %v527
    %v598 = vunpack.c.h.b16 %v527
    %v599 = vunpack.c.l.b16 %v528
    %v600 = vunpack.c.h.b16 %v528
    %v601 = vunpack.c.l.b16 %v529
    %v602 = vunpack.c.h.b16 %v529
    %v603 = vunpack.c.l.b16 %v530
    %v604 = vunpack.c.h.b16 %v530
    %v605 = vunpack.c.l.b16 %v531
    %v606 = vunpack.c.h.b16 %v531
    %v607 = vunpack.c.l.b16 %v532
    %v608 = vunpack.c.h.b16 %v532
    %v609 = vunpack.c.l.b16 %v533
    %v610 = vunpack.c.h.b16 %v533
    %v611 = vunpack.c.l.b16 %v534
    %v612 = vunpack.c.h.b16 %v534
    %v613 = vunpack.c.l.b16 %v535
    %v614 = vunpack.c.h.b16 %v535
    %v615 = vunpack.c.l.b16 %v536
    %v616 = vunpack.c.h.b16 %v536
    %v617 = vunpack.c.l.b16 %v537
    %v618 = vunpack.c.h.b16 %v537
    %v619 = vunpack.c.l.b16 %v538
    %v620 = vunpack.c.h.b16 %v538
    %v621 = vunpack.c.l.b16 %v539
    %v622 = vunpack.c.h.b16 %v539
    %v623 = vunpack.c.l.b16 %v540
    %v624 = vunpack.c.h.b16 %v540
    %v625 = vunpack.c.l.b16 %v541
    %v626 = vunpack.c.h.b16 %v541
    %v627 = vunpack.c.l.b16 %v542
    %v628 = vunpack.c.h.b16 %v542
    %v629 = vunpack.c.l.b16 %v543
    %v630 = vunpack.c.h.b16 %v543
    %v631 = vunpack.c.l.b16 %v544
    %v632 = vunpack.c.h.b16 %v544
    %v633 = vunpack.c.l.b16 %v545
    %v634 = vunpack.c.h.b16 %v545
    %v635 = vunpack.c.l.b16 %v546
    %v636 = vunpack.c.h.b16 %v546
    %v637 = vunpack.c.l.b16 %v547
    %v638 = vunpack.c.h.b16 %v547
    %v639 = vunpack.c.l.b16 %v548
    %v640 = vunpack.c.h.b16 %v548
    %v641 = vunpack.c.l.b16 %v549
    %v642 = vunpack.c.h.b16 %v549
    %v643 = vunpack.c.l.b16 %v550
    %v644 = vunpack.c.h.b16 %v550
    %v645 = vunpack.c.l.b16 %v551
    %v646 = vunpack.c.h.b16 %v551
    %v647 = vunpack.c.l.b16 %v552
    %v648 = vunpack.c.h.b16 %v552
    %v649 = vunpack.c.l.b16 %v553
    %v650 = vunpack.c.h.b16 %v553
    %v651 = vpack.c.b16 %v589, %v587
    %v652 = vpack.c.b16 %v590, %v588
    %v653 = vpack.c.b16 %v593, %v591
    %v654 = vpack.c.b16 %v594, %v592
    %v655 = vpack.c.b16 %v597, %v595
    %v656 = vpack.c.b16 %v598, %v596
    %v657 = vpack.c.b16 %v601, %v599
    %v658 = vpack.c.b16 %v602, %v600
    %v659 = vpack.c.b16 %v605, %v603
    %v660 = vpack.c.b16 %v606, %v604
    %v661 = vpack.c.b16 %v609, %v607
    %v662 = vpack.c.b16 %v610, %v608
    %v663 = vpack.c.b16 %v613, %v611
    %v664 = vpack.c.b16 %v614, %v612
    %v665 = vpack.c.b16 %v617, %v615
    %v666 = vpack.c.b16 %v618, %v616
    %v667 = vpack.c.b16 %v621, %v619
    %v668 = vpack.c.b16 %v622, %v620
    %v669 = vpack.c.b16 %v625, %v623
    %v670 = vpack.c.b16 %v626, %v624
    %v671 = vpack.c.b16 %v629, %v627
    %v672 = vpack.c.b16 %v630, %v628
    %v673 = vpack.c.b16 %v633, %v631
    %v674 = vpack.c.b16 %v634, %v632
    %v675 = vpack.c.b16 %v637, %v635
    %v676 = vpack.c.b16 %v638, %v636
    %v677 = vpack.c.b16 %v641, %v639
    %v678 = vpack.c.b16 %v642, %v640
    %v679 = vpack.c.b16 %v645, %v643
    %v680 = vpack.c.b16 %v646, %v644
    %v681 = vpack.c.b16 %v649, %v647
    %v682 = vpack.c.b16 %v650, %v648
    %v716 = vperm.slane %v554, 0
    %v717 = vperm.slane %v554, 1
    %720 = vmatpush.bf16.msra.mxu0 %v665
    %721 = vmatpush.bf16.msra.mxu0 %v663
    %722 = vmatpush.bf16.msra.mxu0 %v661
    %723 = vmatpush.bf16.msra.mxu0 %v659
    %724 = vmatpush.bf16.msra.mxu0 %v657
    %725 = vmatpush.bf16.msra.mxu0 %v655
    %726 = vmatpush.bf16.msra.mxu0 %v653
    %727 = vmatpush.bf16.msra.mxu0 %v651
    %728 = vmatmul.bf16.gmra.mxu0 %v520
    %v729 = vpop.f32.mrf.mxu0
    %v730 = vadd.f32 %v716, %v729
    %v731 = vpop.f32.mrf.mxu0
    %732 = vdwg.mxu0
    %733 = vmatpush.bf16.msra.mxu0 %v681
    %734 = vmatpush.bf16.msra.mxu0 %v679
    %735 = vmatpush.bf16.msra.mxu0 %v677
    %736 = vmatpush.bf16.msra.mxu0 %v675
    %737 = vmatpush.bf16.msra.mxu0 %v673
    %738 = vmatpush.bf16.msra.mxu0 %v671
    %739 = vmatpush.bf16.msra.mxu0 %v669
    %740 = vmatpush.bf16.msra.mxu0 %v667
    %741 = vmatmul.bf16.gmra.mxu0 %v521
    %v742 = vpop.f32.mrf.mxu0
    %v743 = vadd.f32 %v730, %v742
    %v744 = vpop.f32.mrf.mxu0
    %745 = vdwg.mxu0
    %746 = vmatpush.bf16.msra.mxu0 %v666
    %747 = vmatpush.bf16.msra.mxu0 %v664
    %748 = vmatpush.bf16.msra.mxu0 %v662
    %749 = vmatpush.bf16.msra.mxu0 %v660
    %750 = vmatpush.bf16.msra.mxu0 %v658
    %751 = vmatpush.bf16.msra.mxu0 %v656
    %752 = vmatpush.bf16.msra.mxu0 %v654
    %753 = vmatpush.bf16.msra.mxu0 %v652
    %754 = vmatmul.bf16.gmra.mxu0 %v520
    %v755 = vpop.f32.mrf.mxu0
    %v756 = vadd.f32 %v717, %v755
    %v757 = vpop.f32.mrf.mxu0
    %758 = vdwg.mxu0
    %759 = vmatpush.bf16.msra.mxu0 %v682
    %760 = vmatpush.bf16.msra.mxu0 %v680
    %761 = vmatpush.bf16.msra.mxu0 %v678
    %762 = vmatpush.bf16.msra.mxu0 %v676
    %763 = vmatpush.bf16.msra.mxu0 %v674
    %764 = vmatpush.bf16.msra.mxu0 %v672
    %765 = vmatpush.bf16.msra.mxu0 %v670
    %766 = vmatpush.bf16.msra.mxu0 %v668
    %767 = vmatmul.bf16.gmra.mxu0 %v521
    %v768 = vpop.f32.mrf.mxu0
    %v769 = vadd.f32 %v756, %v768
    %v770 = vpop.f32.mrf.mxu0
    %771 = vdwg.mxu0
    %v772 = vld [vmem:[#allocation11] sm:$0xff]
    %v773 = vld [vmem:[#allocation11 + $0x8] sm:$0xff]
    %v774 = vld [vmem:[#allocation11 + $0x10] sm:$0xff]
    %v775 = vld [vmem:[#allocation11 + $0x18] sm:$0xff]
    %v776 = vld [vmem:[#allocation11 + $0x20] sm:$0xff]
    %v777 = vld [vmem:[#allocation11 + $0x28] sm:$0xff]
    %v778 = vld [vmem:[#allocation11 + $0x30] sm:$0xff]
    %v779 = vld [vmem:[#allocation11 + $0x38] sm:$0xff]
    %v780 = vld [vmem:[#allocation11 + $0x40] sm:$0xff]
    %v781 = vld [vmem:[#allocation11 + $0x48] sm:$0xff]
    %v782 = vld [vmem:[#allocation11 + $0x50] sm:$0xff]
    %v783 = vld [vmem:[#allocation11 + $0x58] sm:$0xff]
    %v784 = vld [vmem:[#allocation11 + $0x60] sm:$0xff]
    %v785 = vld [vmem:[#allocation11 + $0x68] sm:$0xff]
    %v786 = vld [vmem:[#allocation11 + $0x70] sm:$0xff]
    %v787 = vld [vmem:[#allocation11 + $0x78] sm:$0xff]
    %v788 = vld [vmem:[#allocation11 + $0x80] sm:$0xff]
    %v789 = vld [vmem:[#allocation11 + $0x88] sm:$0xff]
    %v790 = vld [vmem:[#allocation11 + $0x90] sm:$0xff]
    %v791 = vld [vmem:[#allocation11 + $0x98] sm:$0xff]
    %v792 = vld [vmem:[#allocation11 + $0xa0] sm:$0xff]
    %v793 = vld [vmem:[#allocation11 + $0xa8] sm:$0xff]
    %v794 = vld [vmem:[#allocation11 + $0xb0] sm:$0xff]
    %v795 = vld [vmem:[#allocation11 + $0xb8] sm:$0xff]
    %v796 = vld [vmem:[#allocation11 + $0xc0] sm:$0xff]
    %v797 = vld [vmem:[#allocation11 + $0xc8] sm:$0xff]
    %v798 = vld [vmem:[#allocation11 + $0xd0] sm:$0xff]
    %v799 = vld [vmem:[#allocation11 + $0xd8] sm:$0xff]
    %v800 = vld [vmem:[#allocation11 + $0xe0] sm:$0xff]
    %v801 = vld [vmem:[#allocation11 + $0xe8] sm:$0xff]
    %v802 = vld [vmem:[#allocation11 + $0xf0] sm:$0xff]
    %v803 = vld [vmem:[#allocation11 + $0xf8] sm:$0xff]
    %v804 = vld [vmem:[%s8] sm:$0x3]
    %v837 = vunpack.c.l.b16 %v772
    %v838 = vunpack.c.h.b16 %v772
    %v839 = vunpack.c.l.b16 %v773
    %v840 = vunpack.c.h.b16 %v773
    %v841 = vunpack.c.l.b16 %v774
    %v842 = vunpack.c.h.b16 %v774
    %v843 = vunpack.c.l.b16 %v775
    %v844 = vunpack.c.h.b16 %v775
    %v845 = vunpack.c.l.b16 %v776
    %v846 = vunpack.c.h.b16 %v776
    %v847 = vunpack.c.l.b16 %v777
    %v848 = vunpack.c.h.b16 %v777
    %v849 = vunpack.c.l.b16 %v778
    %v850 = vunpack.c.h.b16 %v778
    %v851 = vunpack.c.l.b16 %v779
    %v852 = vunpack.c.h.b16 %v779
    %v853 = vunpack.c.l.b16 %v780
    %v854 = vunpack.c.h.b16 %v780
    %v855 = vunpack.c.l.b16 %v781
    %v856 = vunpack.c.h.b16 %v781
    %v857 = vunpack.c.l.b16 %v782
    %v858 = vunpack.c.h.b16 %v782
    %v859 = vunpack.c.l.b16 %v783
    %v860 = vunpack.c.h.b16 %v783
    %v861 = vunpack.c.l.b16 %v784
    %v862 = vunpack.c.h.b16 %v784
    %v863 = vunpack.c.l.b16 %v785
    %v864 = vunpack.c.h.b16 %v785
    %v865 = vunpack.c.l.b16 %v786
    %v866 = vunpack.c.h.b16 %v786
    %v867 = vunpack.c.l.b16 %v787
    %v868 = vunpack.c.h.b16 %v787
    %v869 = vunpack.c.l.b16 %v788
    %v870 = vunpack.c.h.b16 %v788
    %v871 = vunpack.c.l.b16 %v789
    %v872 = vunpack.c.h.b16 %v789
    %v873 = vunpack.c.l.b16 %v790
    %v874 = vunpack.c.h.b16 %v790
    %v875 = vunpack.c.l.b16 %v791
    %v876 = vunpack.c.h.b16 %v791
    %v877 = vunpack.c.l.b16 %v792
    %v878 = vunpack.c.h.b16 %v792
    %v879 = vunpack.c.l.b16 %v793
    %v880 = vunpack.c.h.b16 %v793
    %v881 = vunpack.c.l.b16 %v794
    %v882 = vunpack.c.h.b16 %v794
    %v883 = vunpack.c.l.b16 %v795
    %v884 = vunpack.c.h.b16 %v795
    %v885 = vunpack.c.l.b16 %v796
    %v886 = vunpack.c.h.b16 %v796
    %v887 = vunpack.c.l.b16 %v797
    %v888 = vunpack.c.h.b16 %v797
    %v889 = vunpack.c.l.b16 %v798
    %v890 = vunpack.c.h.b16 %v798
    %v891 = vunpack.c.l.b16 %v799
    %v892 = vunpack.c.h.b16 %v799
    %v893 = vunpack.c.l.b16 %v800
    %v894 = vunpack.c.h.b16 %v800
    %v895 = vunpack.c.l.b16 %v801
    %v896 = vunpack.c.h.b16 %v801
    %v897 = vunpack.c.l.b16 %v802
    %v898 = vunpack.c.h.b16 %v802
    %v899 = vunpack.c.l.b16 %v803
    %v900 = vunpack.c.h.b16 %v803
    %v901 = vpack.c.b16 %v839, %v837
    %v902 = vpack.c.b16 %v840, %v838
    %v903 = vpack.c.b16 %v843, %v841
    %v904 = vpack.c.b16 %v844, %v842
    %v905 = vpack.c.b16 %v847, %v845
    %v906 = vpack.c.b16 %v848, %v846
    %v907 = vpack.c.b16 %v851, %v849
    %v908 = vpack.c.b16 %v852, %v850
    %v909 = vpack.c.b16 %v855, %v853
    %v910 = vpack.c.b16 %v856, %v854
    %v911 = vpack.c.b16 %v859, %v857
    %v912 = vpack.c.b16 %v860, %v858
    %v913 = vpack.c.b16 %v863, %v861
    %v914 = vpack.c.b16 %v864, %v862
    %v915 = vpack.c.b16 %v867, %v865
    %v916 = vpack.c.b16 %v868, %v866
    %v917 = vpack.c.b16 %v871, %v869
    %v918 = vpack.c.b16 %v872, %v870
    %v919 = vpack.c.b16 %v875, %v873
    %v920 = vpack.c.b16 %v876, %v874
    %v921 = vpack.c.b16 %v879, %v877
    %v922 = vpack.c.b16 %v880, %v878
    %v923 = vpack.c.b16 %v883, %v881
    %v924 = vpack.c.b16 %v884, %v882
    %v925 = vpack.c.b16 %v887, %v885
    %v926 = vpack.c.b16 %v888, %v886
    %v927 = vpack.c.b16 %v891, %v889
    %v928 = vpack.c.b16 %v892, %v890
    %v929 = vpack.c.b16 %v895, %v893
    %v930 = vpack.c.b16 %v896, %v894
    %v931 = vpack.c.b16 %v899, %v897
    %v932 = vpack.c.b16 %v900, %v898
    %v966 = vperm.slane %v804, 0
    %v967 = vperm.slane %v804, 1
    %970 = vmatpush.bf16.msra.mxu0 %v915
    %971 = vmatpush.bf16.msra.mxu0 %v913
    %972 = vmatpush.bf16.msra.mxu0 %v911
    %973 = vmatpush.bf16.msra.mxu0 %v909
    %974 = vmatpush.bf16.msra.mxu0 %v907
    %975 = vmatpush.bf16.msra.mxu0 %v905
    %976 = vmatpush.bf16.msra.mxu0 %v903
    %977 = vmatpush.bf16.msra.mxu0 %v901
    %978 = vmatmul.bf16.gmra.mxu0 %v520
    %v979 = vpop.f32.mrf.mxu0
    %v980 = vadd.f32 %v966, %v979
    %v981 = vpop.f32.mrf.mxu0
    %982 = vdwg.mxu0
    %983 = vmatpush.bf16.msra.mxu0 %v931
    %984 = vmatpush.bf16.msra.mxu0 %v929
    %985 = vmatpush.bf16.msra.mxu0 %v927
    %986 = vmatpush.bf16.msra.mxu0 %v925
    %987 = vmatpush.bf16.msra.mxu0 %v923
    %988 = vmatpush.bf16.msra.mxu0 %v921
    %989 = vmatpush.bf16.msra.mxu0 %v919
    %990 = vmatpush.bf16.msra.mxu0 %v917
    %991 = vmatmul.bf16.gmra.mxu0 %v521
    %v992 = vpop.f32.mrf.mxu0
    %v993 = vadd.f32 %v980, %v992
    %v994 = vpop.f32.mrf.mxu0
    %995 = vdwg.mxu0
    %996 = vmatpush.bf16.msra.mxu0 %v916
    %997 = vmatpush.bf16.msra.mxu0 %v914
    %998 = vmatpush.bf16.msra.mxu0 %v912
    %999 = vmatpush.bf16.msra.mxu0 %v910
    %1000 = vmatpush.bf16.msra.mxu0 %v908
    %1001 = vmatpush.bf16.msra.mxu0 %v906
    %1002 = vmatpush.bf16.msra.mxu0 %v904
    %1003 = vmatpush.bf16.msra.mxu0 %v902
    %1004 = vmatmul.bf16.gmra.mxu0 %v520
    %v1005 = vpop.f32.mrf.mxu0
    %v1006 = vadd.f32 %v967, %v1005
    %v1007 = vpop.f32.mrf.mxu0
    %1008 = vdwg.mxu0
    %1009 = vmatpush.bf16.msra.mxu0 %v932
    %1010 = vmatpush.bf16.msra.mxu0 %v930
    %1011 = vmatpush.bf16.msra.mxu0 %v928
    %1012 = vmatpush.bf16.msra.mxu0 %v926
    %1013 = vmatpush.bf16.msra.mxu0 %v924
    %1014 = vmatpush.bf16.msra.mxu0 %v922
    %1015 = vmatpush.bf16.msra.mxu0 %v920
    %1016 = vmatpush.bf16.msra.mxu0 %v918
    %1017 = vmatmul.bf16.gmra.mxu0 %v521
    %v1018 = vpop.f32.mrf.mxu0
    %v1019 = vadd.f32 %v1006, %v1018
    %v1020 = vpop.f32.mrf.mxu0
    %1021 = vdwg.mxu0
    %v1024 = vrot.slane %v769, 7
    %vm1025 = vcmask 1040384
    %v1026 = vsel %vm1025, %v743, %v1024
    %v1028 = vlaneseq
    %vm1029 = vcmp.ge.s32.totalorder %v1028, 0
    %vm1030 = vcmp.lt.s32.totalorder %v1028, 256
    %vm1031 = vmand %vm1029, %vm1030
    %1032 = vst.msk [vmem:[#allocation13] sm:$0x3] %vm1031, %v1026
    %v1035 = vrot.slane %v1019, 7
    %v1036 = vsel %vm1025, %v993, %v1035
    %1038 = vst.msk [vmem:[#allocation14] sm:$0x3] %vm1031, %v1036
    // Predicated region
    $region62: #{tpu_custom_call.1} parent=1 // pred_check
      _
    $region63: #{tpu_custom_call.1} parent=1 // pred_check_branch
      %1040 = sbr.rel (0) target = $region65
    $region64: #{tpu_custom_call.1} parent=1 // pred_region
      %1042 = vsyncadd [#allocation4], 0
      %s1044 = sshll.u32 [#allocation13], 4
      %s1045 = int_to_ptr.vmem [resolvable:$true] %s1044
      %s1046 = sshll.u32 %s9, 4
      %s1047 = int_to_ptr.hbm [resolvable:$true] %s1046
      %1049 = dma.vmem_to_hbm [thread:$0]  %s1045, 32, %s1047, [#allocation4]
    $region65: #{tpu_custom_call.1} parent=1 // pred_fallthru
      _
    // Predicated region
    $region66: #{tpu_custom_call.1} parent=1 // pred_check
      _
    $region67: #{tpu_custom_call.1} parent=1 // pred_check_branch
      %1051 = sbr.rel (0) target = $region69
    $region68: #{tpu_custom_call.1} parent=1 // pred_region
      %1053 = vsyncadd [#allocation15], 0
      %s1055 = sshll.u32 [#allocation14], 4
      %s1056 = int_to_ptr.vmem [resolvable:$true] %s1055
      %s1057 = sshll.u32 %s10, 4
      %s1058 = int_to_ptr.hbm [resolvable:$true] %s1057
      %1060 = dma.vmem_to_hbm [thread:$0]  %s1056, 32, %s1058, [#allocation15]
    $region69: #{tpu_custom_call.1} parent=1 // pred_fallthru
      _
    // Predicated region
    $region70: #{tpu_custom_call.1} parent=1 // pred_check
      _
    $region71: #{tpu_custom_call.1} parent=1 // pred_check_branch
      %1062 = sbr.rel (0) target = $region73
    $region72: #{tpu_custom_call.1} parent=1 // pred_region
      %1064 = dma.done [#allocation4], 32
    $region73: #{tpu_custom_call.1} parent=1 // pred_fallthru
      _
    // Predicated region
    $region74: #{tpu_custom_call.1} parent=1 // pred_check
      _
    $region75: #{tpu_custom_call.1} parent=1 // pred_check_branch
      %1066 = sbr.rel (0) target = $region77
    $region76: #{tpu_custom_call.1} parent=1 // pred_region
      %1068 = dma.done [#allocation15], 32
    $region77: #{tpu_custom_call.1} parent=1 // pred_fallthru
      _
    %1069 = vsyncpa [#allocation3], 1
    %1070 = vsyncpa [#allocation6], 1
    %1071 = vsyncpa [#allocation9], 1
    %1072 = vsyncpa [#allocation12], 1
    %1073 = vsyncpa [#allocation4], 1
    %1074 = vsyncpa [#allocation15], 1

</llo_original>
